<compile_context>
chip_gen: v7x
topology: tpu7x:2x2x1
jax: 0.10.0
libtpu: 0.0.40
codegen_flags: <defaults>
</compile_context>

<pallas_src>
import jax
import jax.numpy as jnp
from jax import lax
from jax.experimental import pallas as pl
from jax.experimental.pallas import tpu as pltpu


def generator_kernel(x_ref, wenc_ref, aux_ref, wgen_ref, bgen_ref, out_ref):
    z2 = aux_ref.shape[1]                 # 2 * z_dim (full 128-lane vreg width)
    z_dim = z2 // 2

    x = x_ref[...]                                                        # (1, insize) bf16
    # fused encoder: one matmul, result row = [mu | log_var]
    d = jnp.dot(x, wenc_ref[...], preferred_element_type=jnp.float32) \
        + aux_ref[0:1, :]                                                 # (1, 2*z_dim) f32

    # lane-rotate halves so log_var sits under mu (XLU slot; free alongside MXU/VPU)
    rolled = pltpu.roll(d, shift=z_dim, axis=1)                           # [log_var | mu]

    # reparameterization on the first z_dim lanes; upper lanes masked to exactly 0
    lane = lax.broadcasted_iota(jnp.int32, d.shape, 1)
    zsig = aux_ref[1:2, :]                                                # z_signal, zero-padded
    eps = jnp.where(lane < z_dim, jnp.exp(rolled * 0.5) * zsig, 0.0)
    z_pad = d + eps   # lanes [0, z_dim): mu + exp(log_var/2)*zsig; rest killed by zero rows of wgen

    # gen linear (padded rows of wgen are zero, so upper lanes contribute nothing)
    wb = jnp.dot(z_pad.astype(wgen_ref.dtype), wgen_ref[...],
                 preferred_element_type=jnp.float32) + bgen_ref[...]      # (1, outsize)

    # global L2 normalization: multiply by rsqrt (EUP) instead of dividing
    out_ref[...] = wb * lax.rsqrt(jnp.sum(wb * wb))


def _full_spec(shape):
    # whole-array block, no grid
    return pl.BlockSpec(shape, lambda: (0,) * len(shape))


def prepare_params(params, *, z_dim, outsize):
    """One-time prep: fuse/transpose/pad/cast params (hoisted out of the per-call path)."""
    w_enc, b_enc = params["w_enc"], params["b_enc"]   # (2*z_dim, insize), (2*z_dim,)
    w_gen, b_gen = params["w_gen"], params["b_gen"]   # (outsize, z_dim), (outsize,)

    wenc_t = jnp.asarray(w_enc.T, dtype=jnp.bfloat16)                     # (insize, 2*z_dim)
    b_enc_row = jnp.asarray(b_enc.reshape(1, 2 * z_dim), jnp.float32)     # (1, 2*z_dim)
    wgen_pad = jnp.zeros((2 * z_dim, outsize), jnp.bfloat16)
    wgen_pad = wgen_pad.at[:z_dim, :].set(w_gen.T.astype(jnp.bfloat16))   # (2*z_dim, outsize)
    b_gen_row = jnp.asarray(b_gen.reshape(1, outsize), jnp.float32)       # (1, outsize)
    return {"wenc_t": wenc_t, "b_enc_row": b_enc_row,
            "wgen_pad": wgen_pad, "b_gen_row": b_gen_row}


def generator_forward(task_context, prep, z_signal, *, z_dim, outsize):
    """task_context: (insize,) f32; z_signal: (1, z_dim) f32 (the randn sample)."""
    insize = task_context.shape[0]
    x = task_context.reshape(1, insize).astype(jnp.bfloat16)

    # pack the two tiny (1, 2*z_dim) operands into one (2, 2*z_dim) aux array
    zsig_pad = jnp.zeros((1, 2 * z_dim), jnp.float32)
    zsig_pad = zsig_pad.at[:, :z_dim].set(z_signal.astype(jnp.float32))
    aux = jnp.concatenate([prep["b_enc_row"], zsig_pad], axis=0)          # (2, 2*z_dim)

    args = (x, prep["wenc_t"], aux, prep["wgen_pad"], prep["b_gen_row"])

    return pl.pallas_call(
        generator_kernel,
        out_shape=jax.ShapeDtypeStruct((1, outsize), jnp.float32),
        in_specs=[_full_spec(a.shape) for a in args],
        out_specs=_full_spec((1, outsize)),
    )(*args)


def init_params(key, insize, outsize, z_dim):
    """Deterministic nn.Linear-style init: U(-1/sqrt(fan_in), 1/sqrt(fan_in))."""
    k1, k2, k3, k4 = jax.random.split(key, 4)
    enc_bound = 1.0 / (insize ** 0.5)
    gen_bound = 1.0 / (z_dim ** 0.5)
    return {
        "w_enc": jax.random.uniform(k1, (2 * z_dim, insize), jnp.float32,
                                    -enc_bound, enc_bound),
        "b_enc": jax.random.uniform(k2, (2 * z_dim,), jnp.float32,
                                    -enc_bound, enc_bound),
        "w_gen": jax.random.uniform(k3, (outsize, z_dim), jnp.float32,
                                    -gen_bound, gen_bound),
        "b_gen": jax.random.uniform(k4, (outsize,), jnp.float32,
                                    -gen_bound, gen_bound),
    }


def reference_forward(task_context, params, z_signal, *, z_dim, outsize):
    dist = params["w_enc"] @ task_context + params["b_enc"]
    mu, log_var = dist[:z_dim], dist[z_dim:]
    z = mu[None, :] + jnp.exp(log_var[None, :] / 2.0) * z_signal
    wb = z @ params["w_gen"].T + params["b_gen"][None, :]
    weight = wb[:, :outsize]
    return weight / jnp.linalg.norm(weight.reshape(-1))


if __name__ == "__main__":
    insize, outsize, z_dim = 256, 256, 64   # small shapes consistent with the module

    key = jax.random.PRNGKey(0)
    kp, kx, kz = jax.random.split(key, 3)
    params = init_params(kp, insize, outsize, z_dim)
    task_context = jax.random.normal(kx, (insize,), jnp.float32)
    z_signal = jax.random.normal(kz, (1, z_dim), jnp.float32)  # replaces torch.randn

    prep = prepare_params(params, z_dim=z_dim, outsize=outsize)
    out = generator_forward(task_context, prep, z_signal,
                            z_dim=z_dim, outsize=outsize)
    out = jax.block_until_ready(out)

    # sanity checks
    assert out.shape == (1, outsize)
    assert bool(jnp.all(jnp.isfinite(out)))
    norm = float(jnp.linalg.norm(out.reshape(-1)))
    assert abs(norm - 1.0) < 1e-3, f"output norm {norm} != 1"
    ref = reference_forward(task_context, params, z_signal,
                            z_dim=z_dim, outsize=outsize)
    assert bool(jnp.allclose(out, ref, atol=1e-2, rtol=1e-2)), "mismatch vs reference"

    print("KERNEL_OK")
</pallas_src>

<mosaic_0001>
module attributes {stable_mosaic.version = 11 : i64} {
  func.func @generator_kernel(%arg0: memref<1x256xbf16, #tpu.memory_space<vmem>>, %arg1: memref<256x128xbf16, #tpu.memory_space<vmem>>, %arg2: memref<2x128xf32, #tpu.memory_space<vmem>>, %arg3: memref<128x256xbf16, #tpu.memory_space<vmem>>, %arg4: memref<1x256xf32, #tpu.memory_space<vmem>>, %arg5: memref<1x256xf32, #tpu.memory_space<vmem>>) attributes {dimension_semantics = [], scalar_prefetch = 0 : i64, scratch_operands = 0 : i64, tpu.core_type = #tpu.core_type<tc>} {
    %c0 = arith.constant 0 : index
    %c0_0 = arith.constant 0 : index
    %0 = vector.load %arg0[%c0, %c0_0] : memref<1x256xbf16, #tpu.memory_space<vmem>>, vector<1x256xbf16>
    %c0_1 = arith.constant 0 : index
    %c0_2 = arith.constant 0 : index
    %1 = vector.load %arg1[%c0_1, %c0_2] : memref<256x128xbf16, #tpu.memory_space<vmem>>, vector<256x128xbf16>
    %cst = arith.constant dense<0.000000e+00> : vector<1x128xf32>
    %2 = tpu.matmul %0, %1, %cst {dimension_numbers = #tpu.dot_dimension_numbers<[1], [0], [0], [1], [0, 0, 1, 1], [], []>} : vector<1x256xbf16>, vector<256x128xbf16>, vector<1x128xf32> -> vector<1x128xf32>
    %c0_3 = arith.constant 0 : index
    %c0_4 = arith.constant 0 : index
    %3 = vector.load %arg2[%c0_3, %c0_4] : memref<2x128xf32, #tpu.memory_space<vmem>>, vector<1x128xf32>
    %4 = arith.addf %2, %3 : vector<1x128xf32>
    %c64_i32 = arith.constant 64 : i32
    %5 = tpu.dynamic_rotate %4 by %c64_i32 dim 1 : vector<1x128xf32>, i32 -> vector<1x128xf32>
    %6 = tpu.iota {dimensions = array<i32: 1>} : vector<1x128xi32>
    %c1 = arith.constant 1 : index
    %c0_5 = arith.constant 0 : index
    %7 = vector.load %arg2[%c1, %c0_5] : memref<2x128xf32, #tpu.memory_space<vmem>>, vector<1x128xf32>
    %c64_i32_6 = arith.constant 64 : i32
    %8 = vector.broadcast %c64_i32_6 : i32 to vector<1x128xi32>
    %9 = arith.cmpi slt, %6, %8 : vector<1x128xi32>
    %cst_7 = arith.constant 5.000000e-01 : f32
    %10 = vector.broadcast %cst_7 : f32 to vector<1x128xf32>
    %11 = arith.mulf %5, %10 : vector<1x128xf32>
    %12 = math.exp %11 : vector<1x128xf32>
    %13 = arith.mulf %12, %7 : vector<1x128xf32>
    %cst_8 = arith.constant 0.000000e+00 : f32
    %14 = vector.broadcast %cst_8 : f32 to vector<1x128xf32>
    %15 = arith.select %9, %13, %14 : vector<1x128xi1>, vector<1x128xf32>
    %16 = arith.addf %4, %15 : vector<1x128xf32>
    %17 = arith.truncf %16 : vector<1x128xf32> to vector<1x128xbf16>
    %c0_9 = arith.constant 0 : index
    %c0_10 = arith.constant 0 : index
    %18 = vector.load %arg3[%c0_9, %c0_10] : memref<128x256xbf16, #tpu.memory_space<vmem>>, vector<128x256xbf16>
    %cst_11 = arith.constant dense<0.000000e+00> : vector<1x256xf32>
    %19 = tpu.matmul %17, %18, %cst_11 {dimension_numbers = #tpu.dot_dimension_numbers<[1], [0], [0], [1], [0, 0, 1, 1], [], []>} : vector<1x128xbf16>, vector<128x256xbf16>, vector<1x256xf32> -> vector<1x256xf32>
    %c0_12 = arith.constant 0 : index
    %c0_13 = arith.constant 0 : index
    %20 = vector.load %arg4[%c0_12, %c0_13] : memref<1x256xf32, #tpu.memory_space<vmem>>, vector<1x256xf32>
    %21 = arith.addf %19, %20 : vector<1x256xf32>
    %22 = arith.mulf %21, %21 : vector<1x256xf32>
    %23 = vector.shape_cast %22 : vector<1x256xf32> to vector<1x1x256xf32>
    %cst_14 = arith.constant dense<0.000000e+00> : vector<1xf32>
    %24 = vector.multi_reduction <add>, %23, %cst_14 [1, 2] : vector<1x1x256xf32> to vector<1xf32>
    %25 = vector.shape_cast %24 : vector<1xf32> to vector<1x1x1xf32>
    %26 = vector.extract %25[0, 0, 0] : f32 from vector<1x1x1xf32>
    %27 = math.rsqrt %26 : f32
    %28 = vector.broadcast %27 : f32 to vector<1x256xf32>
    %29 = arith.mulf %21, %28 : vector<1x256xf32>
    %c0_15 = arith.constant 0 : index
    %c0_16 = arith.constant 0 : index
    %30 = vector.load %arg5[%c0_15, %c0_16] : memref<1x256xf32, #tpu.memory_space<vmem>>, vector<1x256xf32>
    tpu.vector_store %arg5[%c0_15, %c0_16], %29 {strides = array<i32>} : memref<1x256xf32, #tpu.memory_space<vmem>>, vector<1x256xf32>,
    return
  }
}

</mosaic_0001>

<llo_original>
// kernel: tpu_custom_call.1
$region0: #{tpu_custom_call.1}
  #allocation0 [shape = 'u32[]', space=smem, size = 0x4, offset = 0x4, fixed_abs, tag = 'smem constant byte address 0x4 - core index']
  #allocation1 [shape = 'u32[144,128]{1,0:T(1,128)}', space=vmem, size = 0x12000, scoped, tag = 'internal scratch']
  %s0 = inlined_call_operand.hbm [shape: bf16[1,256], index: 0, kind: input, shape index: {}]
  %s1 = inlined_call_operand.hbm [shape: bf16[256,128], index: 1, kind: input, shape index: {}]
  %s2 = inlined_call_operand.vmem [shape: f32[2,128], index: 2, kind: input, shape index: {}]
  %s3 = inlined_call_operand.hbm [shape: bf16[128,256], index: 3, kind: input, shape index: {}]
  %s4 = inlined_call_operand.vmem [shape: f32[1,256], index: 4, kind: input, shape index: {}]
  %s5 = inlined_call_operand.hbm [shape: f32[1,256], index: 5, kind: output, shape index: {}]
  %s6 = sld [smem:[#allocation0]]
  $region42: #{tpu_custom_call.1} parent=0
    _
  %s8 = ssub.s32 1, %s6
  %s9 = scalar_select 0, %s8, %s6
  $region1: #{tpu_custom_call.1} parent=0
    #allocation2 [shape = 'u8[1024]{0}', space=vmem, size = 0x400, scoped, tag = 'input window, operand 0, single buffered']
    #allocation3 [shape = 's32[1]{0}', space=sflag, size = 0x4, scoped, tag = 'scoped memory for tpu_custom_call.1']
    #allocation4 [shape = 's32[1]{0}', space=sflag, size = 0x4, scoped, tag = 'scoped memory for tpu_custom_call.1']
    #allocation5 [shape = 'u8[65536]{0}', space=vmem, size = 0x10000, scoped, tag = 'input window, operand 1, single buffered']
    #allocation6 [shape = 's32[1]{0}', space=sflag, size = 0x4, scoped, tag = 'scoped memory for tpu_custom_call.1']
    #allocation7 [shape = 'u8[65536]{0}', space=vmem, size = 0x10000, scoped, tag = 'input window, operand 3, single buffered']
    #allocation8 [shape = 'u8[1024]{0}', space=vmem, size = 0x400, scoped, tag = 'output window, operand 0, single buffered']
    %10 = vsyncpa [#allocation3], 0
    %11 = vsyncpa [#allocation6], 0
    %12 = vsyncpa [#allocation4], 0
    // Predicated region
    $region2: #{tpu_custom_call.1} parent=1 // pred_check
      _
    $region3: #{tpu_custom_call.1} parent=1 // pred_check_branch
      %14 = sbr.rel (0) target = $region5
    $region4: #{tpu_custom_call.1} parent=1 // pred_region
      %s16 = ssub.s32 32, 32
      %17 = vsyncadd [#allocation3], %s16
      %s19 = sshll.u32 [#allocation2], 4
      %s20 = int_to_ptr.vmem [resolvable:$true] %s19
      %22 = dma.hbm_to_vmem [thread:$0]  %s0, 32, %s20, [#allocation3]
    $region5: #{tpu_custom_call.1} parent=1 // pred_fallthru
      _
    // Predicated region
    $region6: #{tpu_custom_call.1} parent=1 // pred_check
      _
    $region7: #{tpu_custom_call.1} parent=1 // pred_check_branch
      %24 = sbr.rel (0) target = $region9
    $region8: #{tpu_custom_call.1} parent=1 // pred_region
      %s26 = ssub.s32 2048, 2048
      %27 = vsyncadd [#allocation6], %s26
      %s28 = sshll.u32 [#allocation5], 4
      %s29 = int_to_ptr.vmem [resolvable:$true] %s28
      %34 = dma.hbm_to_vmem [thread:$0]  %s1, 2048, %s29, [#allocation6], 64, 64, 4
    $region9: #{tpu_custom_call.1} parent=1 // pred_fallthru
      _
    // Predicated region
    $region10: #{tpu_custom_call.1} parent=1 // pred_check
      _
    $region11: #{tpu_custom_call.1} parent=1 // pred_check_branch
      %36 = sbr.rel (0) target = $region13
    $region12: #{tpu_custom_call.1} parent=1 // pred_region
      _
    $region13: #{tpu_custom_call.1} parent=1 // pred_fallthru
      _
    // Predicated region
    $region14: #{tpu_custom_call.1} parent=1 // pred_check
      _
    $region15: #{tpu_custom_call.1} parent=1 // pred_check_branch
      %38 = sbr.rel (0) target = $region17
    $region16: #{tpu_custom_call.1} parent=1 // pred_region
      %s40 = ssub.s32 2048, 2048
      %41 = vsyncadd [#allocation6], %s40
      %s42 = sshll.u32 [#allocation7], 4
      %s43 = int_to_ptr.vmem [resolvable:$true] %s42
      %48 = dma.hbm_to_vmem [thread:$0]  %s3, 2048, %s43, [#allocation6], 128, 128, 8
    $region17: #{tpu_custom_call.1} parent=1 // pred_fallthru
      _
    // Predicated region
    $region18: #{tpu_custom_call.1} parent=1 // pred_check
      _
    $region19: #{tpu_custom_call.1} parent=1 // pred_check_branch
      %50 = sbr.rel (0) target = $region21
    $region20: #{tpu_custom_call.1} parent=1 // pred_region
      _
    $region21: #{tpu_custom_call.1} parent=1 // pred_fallthru
      _
    // Predicated region
    $region22: #{tpu_custom_call.1} parent=1 // pred_check
      _
    $region23: #{tpu_custom_call.1} parent=1 // pred_check_branch
      %52 = sbr.rel (0) target = $region25
    $region24: #{tpu_custom_call.1} parent=1 // pred_region
      %53 = dma.done [#allocation3], 32
    $region25: #{tpu_custom_call.1} parent=1 // pred_fallthru
      _
    // Predicated region
    $region26: #{tpu_custom_call.1} parent=1 // pred_check
      _
    $region27: #{tpu_custom_call.1} parent=1 // pred_check_branch
      %55 = sbr.rel (0) target = $region29
    $region28: #{tpu_custom_call.1} parent=1 // pred_region
      %56 = dma.done [#allocation6], 2048
    $region29: #{tpu_custom_call.1} parent=1 // pred_fallthru
      _
    // Predicated region
    $region30: #{tpu_custom_call.1} parent=1 // pred_check
      _
    $region31: #{tpu_custom_call.1} parent=1 // pred_check_branch
      %58 = sbr.rel (0) target = $region33
    $region32: #{tpu_custom_call.1} parent=1 // pred_region
      %59 = dma.done [#allocation6], 2048
    $region33: #{tpu_custom_call.1} parent=1 // pred_fallthru
      _
    %v61 = vld [vmem:[#allocation2] sm:$0x3]
    %v62 = vld [vmem:[#allocation5] sm:$0xf]
    %v63 = vld [vmem:[#allocation5 + $0x4] sm:$0xf]
    %v64 = vld [vmem:[#allocation5 + $0x8] sm:$0xf]
    %v65 = vld [vmem:[#allocation5 + $0xc] sm:$0xf]
    %v66 = vld [vmem:[#allocation5 + $0x10] sm:$0xf]
    %v67 = vld [vmem:[#allocation5 + $0x14] sm:$0xf]
    %v68 = vld [vmem:[#allocation5 + $0x18] sm:$0xf]
    %v69 = vld [vmem:[#allocation5 + $0x1c] sm:$0xf]
    %v70 = vld [vmem:[#allocation5 + $0x20] sm:$0xf]
    %v71 = vld [vmem:[#allocation5 + $0x24] sm:$0xf]
    %v72 = vld [vmem:[#allocation5 + $0x28] sm:$0xf]
    %v73 = vld [vmem:[#allocation5 + $0x2c] sm:$0xf]
    %v74 = vld [vmem:[#allocation5 + $0x30] sm:$0xf]
    %v75 = vld [vmem:[#allocation5 + $0x34] sm:$0xf]
    %v76 = vld [vmem:[#allocation5 + $0x38] sm:$0xf]
    %v77 = vld [vmem:[#allocation5 + $0x3c] sm:$0xf]
    %v78 = vld [vmem:[#allocation5 + $0x40] sm:$0xf]
    %v79 = vld [vmem:[#allocation5 + $0x44] sm:$0xf]
    %v80 = vld [vmem:[#allocation5 + $0x48] sm:$0xf]
    %v81 = vld [vmem:[#allocation5 + $0x4c] sm:$0xf]
    %v82 = vld [vmem:[#allocation5 + $0x50] sm:$0xf]
    %v83 = vld [vmem:[#allocation5 + $0x54] sm:$0xf]
    %v84 = vld [vmem:[#allocation5 + $0x58] sm:$0xf]
    %v85 = vld [vmem:[#allocation5 + $0x5c] sm:$0xf]
    %v86 = vld [vmem:[#allocation5 + $0x60] sm:$0xf]
    %v87 = vld [vmem:[#allocation5 + $0x64] sm:$0xf]
    %v88 = vld [vmem:[#allocation5 + $0x68] sm:$0xf]
    %v89 = vld [vmem:[#allocation5 + $0x6c] sm:$0xf]
    %v90 = vld [vmem:[#allocation5 + $0x70] sm:$0xf]
    %v91 = vld [vmem:[#allocation5 + $0x74] sm:$0xf]
    %v92 = vld [vmem:[#allocation5 + $0x78] sm:$0xf]
    %v93 = vld [vmem:[#allocation5 + $0x7c] sm:$0xf]
    %v94 = vld [vmem:[%s2] sm:$0x1]
    %v97 = vunpack.c.l.s4 1966171168
    %v98 = vunpack.c.0.s8 %v97
    %v99 = vlaneseq
    %v100 = vshrl.u32 %v99, 7
    %v101 = vsub.s32 %v98, %v100
    %v102 = vrot.slane %v61, %v101
    %v103 = vcombine.high %v102, %v102
    %v105 = vunpack.c.l.s4 1966171168
    %v106 = vunpack.c.0.s8 %v105
    %v107 = vlaneseq
    %v108 = vshrl.u32 %v107, 7
    %v109 = vsub.s32 %v106, %v108
    %v110 = vrot.slane %v102, %v109
    %v112 = vunpack.c.l.s4 1966171168
    %v113 = vunpack.c.0.s8 %v112
    %v114 = vlaneseq
    %v115 = vshrl.u32 %v114, 7
    %v116 = vsub.s32 %v113, %v115
    %v117 = vrot.slane %v103, %v116
    %v152 = vunpack.c.l.b16 %v62
    %v153 = vunpack.c.l.b16 %v63
    %v154 = vunpack.c.l.b16 %v64
    %v155 = vunpack.c.l.b16 %v65
    %v156 = vunpack.c.l.b16 %v66
    %v157 = vunpack.c.l.b16 %v67
    %v158 = vunpack.c.l.b16 %v68
    %v159 = vunpack.c.l.b16 %v69
    %v160 = vunpack.c.l.b16 %v70
    %v161 = vunpack.c.l.b16 %v71
    %v162 = vunpack.c.l.b16 %v72
    %v163 = vunpack.c.l.b16 %v73
    %v164 = vunpack.c.l.b16 %v74
    %v165 = vunpack.c.l.b16 %v75
    %v166 = vunpack.c.l.b16 %v76
    %v167 = vunpack.c.l.b16 %v77
    %v168 = vunpack.c.l.b16 %v78
    %v169 = vunpack.c.l.b16 %v79
    %v170 = vunpack.c.l.b16 %v80
    %v171 = vunpack.c.l.b16 %v81
    %v172 = vunpack.c.l.b16 %v82
    %v173 = vunpack.c.l.b16 %v83
    %v174 = vunpack.c.l.b16 %v84
    %v175 = vunpack.c.l.b16 %v85
    %v176 = vunpack.c.l.b16 %v86
    %v177 = vunpack.c.l.b16 %v87
    %v178 = vunpack.c.l.b16 %v88
    %v179 = vunpack.c.l.b16 %v89
    %v180 = vunpack.c.l.b16 %v90
    %v181 = vunpack.c.l.b16 %v91
    %v182 = vunpack.c.l.b16 %v92
    %v183 = vunpack.c.l.b16 %v93
    %v184 = vpack.c.b16 %v153, %v152
    %v185 = vpack.c.b16 %v155, %v154
    %v186 = vpack.c.b16 %v157, %v156
    %v187 = vpack.c.b16 %v159, %v158
    %v188 = vpack.c.b16 %v161, %v160
    %v189 = vpack.c.b16 %v163, %v162
    %v190 = vpack.c.b16 %v165, %v164
    %v191 = vpack.c.b16 %v167, %v166
    %v192 = vpack.c.b16 %v169, %v168
    %v193 = vpack.c.b16 %v171, %v170
    %v194 = vpack.c.b16 %v173, %v172
    %v195 = vpack.c.b16 %v175, %v174
    %v196 = vpack.c.b16 %v177, %v176
    %v197 = vpack.c.b16 %v179, %v178
    %v198 = vpack.c.b16 %v181, %v180
    %v199 = vpack.c.b16 %v183, %v182
    %216 = vmatprep.subr.bf16.mxu0 0
    %217 = vmatpush1.bf16.msra.mxu0 %v184
    %218 = vmatprep.subr.bf16.mxu0 0
    %219 = vmatpush1.bf16.msra.mxu0 %v185
    %220 = vmatprep.subr.bf16.mxu0 0
    %221 = vmatpush1.bf16.msra.mxu0 %v186
    %222 = vmatprep.subr.bf16.mxu0 0
    %223 = vmatpush1.bf16.msra.mxu0 %v187
    %224 = vmatprep.subr.bf16.mxu0 0
    %225 = vmatpush1.bf16.msra.mxu0 %v188
    %226 = vmatprep.subr.bf16.mxu0 0
    %227 = vmatpush1.bf16.msra.mxu0 %v189
    %228 = vmatprep.subr.bf16.mxu0 0
    %229 = vmatpush1.bf16.msra.mxu0 %v190
    %230 = vmatprep.subr.bf16.mxu0 0
    %231 = vmatpush1.bf16.msra.mxu0 %v191
    %232 = vmatprep.subr.bf16.mxu0 0
    %233 = vmatpush1.bf16.msra.mxu0 %v192
    %234 = vmatprep.subr.bf16.mxu0 0
    %235 = vmatpush1.bf16.msra.mxu0 %v193
    %236 = vmatprep.subr.bf16.mxu0 0
    %237 = vmatpush1.bf16.msra.mxu0 %v194
    %238 = vmatprep.subr.bf16.mxu0 0
    %239 = vmatpush1.bf16.msra.mxu0 %v195
    %240 = vmatprep.subr.bf16.mxu0 0
    %241 = vmatpush1.bf16.msra.mxu0 %v196
    %242 = vmatprep.subr.bf16.mxu0 0
    %243 = vmatpush1.bf16.msra.mxu0 %v197
    %244 = vmatprep.subr.bf16.mxu0 0
    %245 = vmatpush1.bf16.msra.mxu0 %v198
    %246 = vmatprep.subr.bf16.mxu0 0
    %247 = vmatpush1.bf16.msra.mxu0 %v199
    %248 = vmatprep.mubr.bf16.mxu0 %v117
    %249 = vmatmul.mubr.bf16.gmra.mrb[0].mxu0 %v110
    %v250 = vpop.f32.mrb[0].mxu0
    %v251 = vadd.f32 %v94, %v250
    %v252 = vpop.f32.mrb[0].mxu0
    %v253 = vpop.f32.mrb[0].mxu0
    %v254 = vpop.f32.mrb[0].mxu0
    %255 = vdwg.mxu0
    %256 = vrot.lane.b32.xlu0 %v251, 64
    %v257 = vpop.permute.xlu0 %256
    %v258 = vlaneseq
    %v259 = vand.u32 %v258, 127
    %v260 = vld [vmem:[%s2 + $0x1] sm:$0x1]
    %vm261 = vcmp.lt.s32.totalorder %v259, 64
    %v262 = vmul.f32 %v257, 0.5
    %v263 = vmul.f32 %v262, 1.442695
    %v264 = vpow.pop %v263
    %v265 = vmul.f32 %v264, %v260
    %v266 = vsel %vm261, %v265, 0.0
    %v267 = vadd.f32 %v251, %v266
    %v268 = vpack.c.bf16 %v267, %v267
    %v269 = vld [vmem:[#allocation7] sm:$0xff]
    %v270 = vld [vmem:[#allocation7 + $0x8] sm:$0xff]
    %v271 = vld [vmem:[#allocation7 + $0x10] sm:$0xff]
    %v272 = vld [vmem:[#allocation7 + $0x18] sm:$0xff]
    %v273 = vld [vmem:[#allocation7 + $0x20] sm:$0xff]
    %v274 = vld [vmem:[#allocation7 + $0x28] sm:$0xff]
    %v275 = vld [vmem:[#allocation7 + $0x30] sm:$0xff]
    %v276 = vld [vmem:[#allocation7 + $0x38] sm:$0xff]
    %v277 = vld [vmem:[#allocation7 + $0x40] sm:$0xff]
    %v278 = vld [vmem:[#allocation7 + $0x48] sm:$0xff]
    %v279 = vld [vmem:[#allocation7 + $0x50] sm:$0xff]
    %v280 = vld [vmem:[#allocation7 + $0x58] sm:$0xff]
    %v281 = vld [vmem:[#allocation7 + $0x60] sm:$0xff]
    %v282 = vld [vmem:[#allocation7 + $0x68] sm:$0xff]
    %v283 = vld [vmem:[#allocation7 + $0x70] sm:$0xff]
    %v284 = vld [vmem:[#allocation7 + $0x78] sm:$0xff]
    %v285 = vld [vmem:[%s4] sm:$0x3]
    %v302 = vunpack.c.l.b16 %v269
    %v303 = vunpack.c.h.b16 %v269
    %v304 = vunpack.c.l.b16 %v270
    %v305 = vunpack.c.h.b16 %v270
    %v306 = vunpack.c.l.b16 %v271
    %v307 = vunpack.c.h.b16 %v271
    %v308 = vunpack.c.l.b16 %v272
    %v309 = vunpack.c.h.b16 %v272
    %v310 = vunpack.c.l.b16 %v273
    %v311 = vunpack.c.h.b16 %v273
    %v312 = vunpack.c.l.b16 %v274
    %v313 = vunpack.c.h.b16 %v274
    %v314 = vunpack.c.l.b16 %v275
    %v315 = vunpack.c.h.b16 %v275
    %v316 = vunpack.c.l.b16 %v276
    %v317 = vunpack.c.h.b16 %v276
    %v318 = vunpack.c.l.b16 %v277
    %v319 = vunpack.c.h.b16 %v277
    %v320 = vunpack.c.l.b16 %v278
    %v321 = vunpack.c.h.b16 %v278
    %v322 = vunpack.c.l.b16 %v279
    %v323 = vunpack.c.h.b16 %v279
    %v324 = vunpack.c.l.b16 %v280
    %v325 = vunpack.c.h.b16 %v280
    %v326 = vunpack.c.l.b16 %v281
    %v327 = vunpack.c.h.b16 %v281
    %v328 = vunpack.c.l.b16 %v282
    %v329 = vunpack.c.h.b16 %v282
    %v330 = vunpack.c.l.b16 %v283
    %v331 = vunpack.c.h.b16 %v283
    %v332 = vunpack.c.l.b16 %v284
    %v333 = vunpack.c.h.b16 %v284
    %v334 = vpack.c.b16 %v304, %v302
    %v335 = vpack.c.b16 %v305, %v303
    %v336 = vpack.c.b16 %v308, %v306
    %v337 = vpack.c.b16 %v309, %v307
    %v338 = vpack.c.b16 %v312, %v310
    %v339 = vpack.c.b16 %v313, %v311
    %v340 = vpack.c.b16 %v316, %v314
    %v341 = vpack.c.b16 %v317, %v315
    %v342 = vpack.c.b16 %v320, %v318
    %v343 = vpack.c.b16 %v321, %v319
    %v344 = vpack.c.b16 %v324, %v322
    %v345 = vpack.c.b16 %v325, %v323
    %v346 = vpack.c.b16 %v328, %v326
    %v347 = vpack.c.b16 %v329, %v327
    %v348 = vpack.c.b16 %v332, %v330
    %v349 = vpack.c.b16 %v333, %v331
    %v367 = vlaneseq
    %v368 = vshrl.u32 %v367, 7
    %v369 = vsub.s32 0, %v368
    %v370 = vrot.slane %v285, %v369
    %v371 = vlaneseq
    %v372 = vshrl.u32 %v371, 7
    %v373 = vsub.s32 1, %v372
    %v374 = vrot.slane %v285, %v373
    %377 = vmatprep.subr.bf16.mxu0 %v335
    %378 = vmatpush1.bf16.msra.mxu0 %v334
    %379 = vmatprep.subr.bf16.mxu0 %v337
    %380 = vmatpush1.bf16.msra.mxu0 %v336
    %381 = vmatprep.subr.bf16.mxu0 %v339
    %382 = vmatpush1.bf16.msra.mxu0 %v338
    %383 = vmatprep.subr.bf16.mxu0 %v341
    %384 = vmatpush1.bf16.msra.mxu0 %v340
    %385 = vmatprep.subr.bf16.mxu0 %v343
    %386 = vmatpush1.bf16.msra.mxu0 %v342
    %387 = vmatprep.subr.bf16.mxu0 %v345
    %388 = vmatpush1.bf16.msra.mxu0 %v344
    %389 = vmatprep.subr.bf16.mxu0 %v347
    %390 = vmatpush1.bf16.msra.mxu0 %v346
    %391 = vmatprep.subr.bf16.mxu0 %v349
    %392 = vmatpush1.bf16.msra.mxu0 %v348
    %393 = vmatprep.subr.bf16.mxu0 0
    %394 = vmatpush1.bf16.msra.mxu0 0
    %395 = vmatprep.subr.bf16.mxu0 0
    %396 = vmatpush1.bf16.msra.mxu0 0
    %397 = vmatprep.subr.bf16.mxu0 0
    %398 = vmatpush1.bf16.msra.mxu0 0
    %399 = vmatprep.subr.bf16.mxu0 0
    %400 = vmatpush1.bf16.msra.mxu0 0
    %401 = vmatprep.subr.bf16.mxu0 0
    %402 = vmatpush1.bf16.msra.mxu0 0
    %403 = vmatprep.subr.bf16.mxu0 0
    %404 = vmatpush1.bf16.msra.mxu0 0
    %405 = vmatprep.subr.bf16.mxu0 0
    %406 = vmatpush1.bf16.msra.mxu0 0
    %407 = vmatprep.subr.bf16.mxu0 0
    %408 = vmatpush1.bf16.msra.mxu0 0
    %409 = vmatprep.mubr.bf16.mxu0 0
    %410 = vmatmul.mubr.bf16.gmra.mrb[0].mxu0 %v268
    %v411 = vpop.f32.mrb[0].mxu0
    %v412 = vadd.f32 %v370, %v411
    %v413 = vpop.f32.mrb[0].mxu0
    %v414 = vadd.f32 %v374, %v413
    %v415 = vpop.f32.mrb[0].mxu0
    %v416 = vpop.f32.mrb[0].mxu0
    %417 = vdwg.mxu0
    %v418 = vmul.f32 %v412, %v412
    %v419 = vmul.f32 %v414, %v414
    %vm420 = vcmask 1040384
    %v421 = vsel %vm420, %v418, 0.0
    %v422 = vsel %vm420, %v419, 0.0
    %v423 = vadd.f32 %v421, %v422
    %424 = vadd.xlane.f32.xlu0 %v423
    %v425 = vpop.xlane.xlu0 %424
    %v426 = vrot.slane %v425, 4
    %v427 = vadd.f32 %v425, %v426
    %v428 = vrot.slane %v427, 2
    %v429 = vadd.f32 %v427, %v428
    %v430 = vrot.slane %v429, 1
    %v431 = vadd.f32 %v429, %v430
    %s432 = vtos %v431
    %v433 = vstv %s432
    %v434 = vrsqrt.pop %v433
    %s435 = vtos %v434
    %v436 = vstv %s435
    %v437 = vmul.f32 %v412, %v436
    %v438 = vmul.f32 %v414, %v436
    %v441 = vcombine.low %v437, %v438
    %v443 = vunpack.c.l.s4 1966171168
    %v444 = vunpack.c.0.s8 %v443
    %v445 = vlaneseq
    %v446 = vshrl.u32 %v445, 7
    %v447 = vsub.s32 %v444, %v446
    %v448 = vrot.slane %v441, %v447
    %v450 = vunpack.c.l.s4 1966171168
    %v451 = vunpack.c.0.s8 %v450
    %v452 = vlaneseq
    %v453 = vshrl.u32 %v452, 7
    %v454 = vsub.s32 %v451, %v453
    %v455 = vrot.slane %v448, %v454
    %v457 = vlaneseq
    %vm458 = vcmp.ge.s32.totalorder %v457, 0
    %vm459 = vcmp.lt.s32.totalorder %v457, 256
    %vm460 = vmand %vm458, %vm459
    %461 = vst.msk [vmem:[#allocation8] sm:$0x3] %vm460, %v455
    // Predicated region
    $region34: #{tpu_custom_call.1} parent=1 // pred_check
      _
    $region35: #{tpu_custom_call.1} parent=1 // pred_check_branch
      %463 = sbr.rel (0) target = $region37
    $region36: #{tpu_custom_call.1} parent=1 // pred_region
      %s465 = ssub.s32 32, 32
      %466 = vsyncadd [#allocation4], %s465
      %s468 = sshll.u32 [#allocation8], 4
      %s469 = int_to_ptr.vmem [resolvable:$true] %s468
      %471 = dma.vmem_to_hbm [thread:$0]  %s469, 32, %s5, [#allocation4]
    $region37: #{tpu_custom_call.1} parent=1 // pred_fallthru
      _
    // Predicated region
    $region38: #{tpu_custom_call.1} parent=1 // pred_check
      _
    $region39: #{tpu_custom_call.1} parent=1 // pred_check_branch
      %473 = sbr.rel (0) target = $region41
    $region40: #{tpu_custom_call.1} parent=1 // pred_region
      %474 = dma.done [#allocation4], 32
    $region41: #{tpu_custom_call.1} parent=1 // pred_fallthru
      _
    %475 = vsyncpa [#allocation3], 1
    %476 = vsyncpa [#allocation6], 1
    %477 = vsyncpa [#allocation4], 1

</llo_original>
